<compile_context>
chip_gen: v7x
topology: tpu7x:2x2x1
jax: 0.10.0
libtpu: 0.0.40
codegen_flags: <defaults>
</compile_context>

<pallas_src>
import functools
import math

import jax
import jax.numpy as jnp
from jax import lax
from jax.experimental import pallas as pl
from jax.experimental.pallas import tpu as pltpu


def _mha_kernel(x_ref, wqkv_ref, wo_ref, o_ref, cat_ref, *, heads, key_dim):
    """One grid step = one batch element.

    x_ref   : (1, S, D)   input tokens for batch b
    wqkv_ref: (D, 3*D)    fused [Wq | Wk | Wv] projection weights
    wo_ref  : (D, D)      output ("concat") projection weights
    o_ref   : (1, S, D)   output for batch b
    cat_ref : (S, D) f32  VMEM scratch holding concatenated per-head outputs
    """
    dmodel = heads * key_dim
    scale = 1.0 / math.sqrt(key_dim)

    x = x_ref[0].astype(jnp.bfloat16)            # (S, D)
    wqkv = wqkv_ref[...].astype(jnp.bfloat16)    # (D, 3D)
    wo = wo_ref[...].astype(jnp.bfloat16)        # (D, D)

    # Fused Q/K/V projection: one wide MXU matmul, f32 accumulation.
    qkv = jnp.dot(x, wqkv, preferred_element_type=jnp.float32)   # (S, 3D) f32
    q = qkv[:, :dmodel]
    k = qkv[:, dmodel:2 * dmodel]
    v = qkv[:, 2 * dmodel:]

    # Per-head scaled dot-product attention. `heads` is a small static count,
    # so a static Python loop is fine here.
    for h in range(heads):
        lo = h * key_dim
        hi = lo + key_dim
        qh = (q[:, lo:hi] * scale).astype(jnp.bfloat16)          # (S, kd)
        kh = k[:, lo:hi].astype(jnp.bfloat16)                    # (S, kd)
        vh = v[:, lo:hi].astype(jnp.bfloat16)                    # (S, kd)

        # q @ k^T without materializing a transpose of K.
        s = lax.dot_general(
            qh, kh,
            dimension_numbers=(((1,), (1,)), ((), ())),
            preferred_element_type=jnp.float32)                  # (S, S) f32

        # Numerically-stable softmax in f32 (matches F.softmax).
        m = jnp.max(s, axis=-1, keepdims=True)
        e = jnp.exp(s - m)
        p = e * pl.reciprocal(jnp.sum(e, axis=-1, keepdims=True), approx=True)

        attn = jnp.dot(p.astype(jnp.bfloat16), vh,
                       preferred_element_type=jnp.float32)       # (S, kd)
        cat_ref[:, lo:hi] = attn

    # Single full-width (K = D) output projection of the concat activations,
    # written once (lane-dense, no output accumulation across grid steps).
    out = jnp.dot(cat_ref[...].astype(jnp.bfloat16), wo,
                  preferred_element_type=jnp.float32)            # (S, D)
    o_ref[0] = out.astype(o_ref.dtype)


def multi_head_attention(x, wq, wk, wv, wo, *, heads):
    """x: (B, S, D) f32.  wq/wk/wv/wo: (D, D) f32, used as y = x @ W."""
    B, S, D = x.shape
    assert D % heads == 0
    kd = D // heads

    # Fuse the three projection weights into one (D, 3D) operand.
    wqkv = jnp.concatenate([wq, wk, wv], axis=1)

    kernel = functools.partial(_mha_kernel, heads=heads, key_dim=kd)

    # TODO(synk): for long sequences, tile S with a flash-style online-softmax
    # loop over K/V tiles instead of materializing the (S, S) scores (needed
    # to fit VMEM on v7x at realistic S, D).
    return pl.pallas_call(
        kernel,
        out_shape=jax.ShapeDtypeStruct((B, S, D), jnp.float32),
        grid_spec=pltpu.PrefetchScalarGridSpec(
            num_scalar_prefetch=0,
            grid=(B,),
            in_specs=[
                pl.BlockSpec((1, S, D), lambda b: (b, 0, 0)),
                pl.BlockSpec((D, 3 * D), lambda b: (0, 0)),
                pl.BlockSpec((D, D), lambda b: (0, 0)),
            ],
            out_specs=pl.BlockSpec((1, S, D), lambda b: (b, 0, 0)),
            scratch_shapes=[pltpu.VMEM((S, D), jnp.float32)],
        ),
        compiler_params=pltpu.CompilerParams(
            dimension_semantics=("parallel",),
            vmem_limit_bytes=32 * 1024 * 1024,
        ),
    )(x, wqkv, wo)


def _reference(x, wq, wk, wv, wo, *, heads):
    """Pure-JAX replica of the PyTorch forward pass (f32)."""
    B, S, D = x.shape
    kd = D // heads
    q = (x @ wq).reshape(B, S, heads, kd).transpose(0, 2, 1, 3)
    k = (x @ wk).reshape(B, S, heads, kd).transpose(0, 2, 1, 3)
    v = (x @ wv).reshape(B, S, heads, kd).transpose(0, 2, 1, 3)
    score = jnp.einsum("bhqd,bhkd->bhqk", q, k) / math.sqrt(kd)
    p = jax.nn.softmax(score, axis=-1)
    out = jnp.einsum("bhqk,bhkd->bhqd", p, v).transpose(0, 2, 1, 3).reshape(B, S, D)
    return out @ wo


if __name__ == "__main__":
    B, S, D, H = 2, 8, 32, 4

    key = jax.random.PRNGKey(0)
    kx, k1, k2, k3, k4 = jax.random.split(key, 5)

    x = jax.random.normal(kx, (B, S, D), dtype=jnp.float32)
    # Deterministic synthetic weights; stored as (in, out) so y = x @ W
    # (equivalent to nn.Linear(bias=False) with weight W.T).
    wq = jax.random.normal(k1, (D, D), dtype=jnp.float32) * (1.0 / math.sqrt(D))
    wk = jax.random.normal(k2, (D, D), dtype=jnp.float32) * (1.0 / math.sqrt(D))
    wv = jax.random.normal(k3, (D, D), dtype=jnp.float32) * (1.0 / math.sqrt(D))
    wo = jax.random.normal(k4, (D, D), dtype=jnp.float32) * (1.0 / math.sqrt(D))

    out = multi_head_attention(x, wq, wk, wv, wo, heads=H)
    out = jax.block_until_ready(out)

    ref = _reference(x, wq, wk, wv, wo, heads=H)
    assert out.shape == (B, S, D)
    # bf16 MXU inputs (f32 accumulation) -> relaxed tolerance vs f32 reference.
    assert jnp.allclose(out, ref, atol=5e-2, rtol=5e-2), "Pallas output mismatch"

    print("KERNEL_OK")
</pallas_src>

<mosaic_0001>
module attributes {stable_mosaic.version = 11 : i64} {
  func.func @_mha_kernel(%arg0: i32, %arg1: memref<1x8x32xf32, #tpu.memory_space<vmem>>, %arg2: memref<32x96xf32, #tpu.memory_space<vmem>>, %arg3: memref<32x32xf32, #tpu.memory_space<vmem>>, %arg4: memref<1x8x32xf32, #tpu.memory_space<vmem>>, %arg5: memref<8x32xf32, #tpu.memory_space<vmem>>) attributes {dimension_semantics = [#tpu.dimension_semantics<parallel>], iteration_bounds = array<i64: 2>, scalar_prefetch = 0 : i64, scratch_operands = 1 : i64, tpu.core_type = #tpu.core_type<tc>, window_params = [{transform_indices = @transform_0, window_bounds = array<i64: 1, 8, 32>}, {pipeline_mode = #tpu.pipeline_mode<synchronous>, transform_indices = @transform_1, window_bounds = array<i64: 32, 96>}, {pipeline_mode = #tpu.pipeline_mode<synchronous>, transform_indices = @transform_2, window_bounds = array<i64: 32, 32>}, {transform_indices = @transform_3, window_bounds = array<i64: 1, 8, 32>}]} {
    %c0 = arith.constant 0 : index
    %c0_0 = arith.constant 0 : index
    %c0_1 = arith.constant 0 : index
    %0 = vector.load %arg1[%c0, %c0_0, %c0_1] : memref<1x8x32xf32, #tpu.memory_space<vmem>>, vector<1x8x32xf32>
    %1 = vector.shape_cast %0 : vector<1x8x32xf32> to vector<8x32xf32>
    %2 = arith.truncf %1 : vector<8x32xf32> to vector<8x32xbf16>
    %c0_2 = arith.constant 0 : index
    %c0_3 = arith.constant 0 : index
    %3 = vector.load %arg2[%c0_2, %c0_3] : memref<32x96xf32, #tpu.memory_space<vmem>>, vector<32x96xf32>
    %4 = arith.truncf %3 : vector<32x96xf32> to vector<32x96xbf16>
    %c0_4 = arith.constant 0 : index
    %c0_5 = arith.constant 0 : index
    %5 = vector.load %arg3[%c0_4, %c0_5] : memref<32x32xf32, #tpu.memory_space<vmem>>, vector<32x32xf32>
    %6 = arith.truncf %5 : vector<32x32xf32> to vector<32x32xbf16>
    %cst = arith.constant dense<0.000000e+00> : vector<8x96xf32>
    %7 = tpu.matmul %2, %4, %cst {dimension_numbers = #tpu.dot_dimension_numbers<[1], [0], [0], [1], [0, 0, 1, 1], [], []>} : vector<8x32xbf16>, vector<32x96xbf16>, vector<8x96xf32> -> vector<8x96xf32>
    %8 = vector.extract_strided_slice %7 {offsets = [0, 0], sizes = [8, 32], strides = [1, 1]} : vector<8x96xf32> to vector<8x32xf32>
    %9 = vector.extract_strided_slice %7 {offsets = [0, 32], sizes = [8, 32], strides = [1, 1]} : vector<8x96xf32> to vector<8x32xf32>
    %10 = vector.extract_strided_slice %7 {offsets = [0, 64], sizes = [8, 32], strides = [1, 1]} : vector<8x96xf32> to vector<8x32xf32>
    %11 = vector.extract_strided_slice %8 {offsets = [0, 0], sizes = [8, 8], strides = [1, 1]} : vector<8x32xf32> to vector<8x8xf32>
    %cst_6 = arith.constant 0.353553385 : f32
    %12 = vector.broadcast %cst_6 : f32 to vector<8x8xf32>
    %13 = arith.mulf %11, %12 : vector<8x8xf32>
    %14 = arith.truncf %13 : vector<8x8xf32> to vector<8x8xbf16>
    %15 = vector.extract_strided_slice %9 {offsets = [0, 0], sizes = [8, 8], strides = [1, 1]} : vector<8x32xf32> to vector<8x8xf32>
    %16 = arith.truncf %15 : vector<8x8xf32> to vector<8x8xbf16>
    %17 = vector.extract_strided_slice %10 {offsets = [0, 0], sizes = [8, 8], strides = [1, 1]} : vector<8x32xf32> to vector<8x8xf32>
    %18 = arith.truncf %17 : vector<8x8xf32> to vector<8x8xbf16>
    %cst_7 = arith.constant dense<0.000000e+00> : vector<8x8xf32>
    %19 = tpu.matmul %14, %16, %cst_7 {dimension_numbers = #tpu.dot_dimension_numbers<[1], [1], [0], [0], [0, 0, 1, 0], [], []>} : vector<8x8xbf16>, vector<8x8xbf16>, vector<8x8xf32> -> vector<8x8xf32>
    %cst_8 = arith.constant dense<0xFF800000> : vector<8xf32>
    %20 = vector.multi_reduction <maximumf>, %19, %cst_8 [1] : vector<8x8xf32> to vector<8xf32>
    %21 = vector.shape_cast %20 : vector<8xf32> to vector<8x1xf32>
    %22 = vector.broadcast %21 : vector<8x1xf32> to vector<8x8xf32>
    %23 = arith.subf %19, %22 : vector<8x8xf32>
    %24 = math.exp %23 : vector<8x8xf32>
    %cst_9 = arith.constant dense<0.000000e+00> : vector<8xf32>
    %25 = vector.multi_reduction <add>, %24, %cst_9 [1] : vector<8x8xf32> to vector<8xf32>
    %26 = vector.shape_cast %25 : vector<8xf32> to vector<8x1xf32>
    %27 = tpu.reciprocal %26 {approx = true} : vector<8x1xf32> -> vector<8x1xf32>
    %28 = vector.broadcast %27 : vector<8x1xf32> to vector<8x8xf32>
    %29 = arith.mulf %24, %28 : vector<8x8xf32>
    %30 = arith.truncf %29 : vector<8x8xf32> to vector<8x8xbf16>
    %cst_10 = arith.constant dense<0.000000e+00> : vector<8x8xf32>
    %31 = tpu.matmul %30, %18, %cst_10 {dimension_numbers = #tpu.dot_dimension_numbers<[1], [0], [0], [1], [0, 0, 1, 1], [], []>} : vector<8x8xbf16>, vector<8x8xbf16>, vector<8x8xf32> -> vector<8x8xf32>
    %c0_11 = arith.constant 0 : index
    %c0_12 = arith.constant 0 : index
    %32 = vector.load %arg5[%c0_11, %c0_12] : memref<8x32xf32, #tpu.memory_space<vmem>>, vector<8x8xf32>
    tpu.vector_store %arg5[%c0_11, %c0_12], %31 {strides = array<i32>} : memref<8x32xf32, #tpu.memory_space<vmem>>, vector<8x8xf32>,
    %33 = vector.extract_strided_slice %8 {offsets = [0, 8], sizes = [8, 8], strides = [1, 1]} : vector<8x32xf32> to vector<8x8xf32>
    %cst_13 = arith.constant 0.353553385 : f32
    %34 = vector.broadcast %cst_13 : f32 to vector<8x8xf32>
    %35 = arith.mulf %33, %34 : vector<8x8xf32>
    %36 = arith.truncf %35 : vector<8x8xf32> to vector<8x8xbf16>
    %37 = vector.extract_strided_slice %9 {offsets = [0, 8], sizes = [8, 8], strides = [1, 1]} : vector<8x32xf32> to vector<8x8xf32>
    %38 = arith.truncf %37 : vector<8x8xf32> to vector<8x8xbf16>
    %39 = vector.extract_strided_slice %10 {offsets = [0, 8], sizes = [8, 8], strides = [1, 1]} : vector<8x32xf32> to vector<8x8xf32>
    %40 = arith.truncf %39 : vector<8x8xf32> to vector<8x8xbf16>
    %cst_14 = arith.constant dense<0.000000e+00> : vector<8x8xf32>
    %41 = tpu.matmul %36, %38, %cst_14 {dimension_numbers = #tpu.dot_dimension_numbers<[1], [1], [0], [0], [0, 0, 1, 0], [], []>} : vector<8x8xbf16>, vector<8x8xbf16>, vector<8x8xf32> -> vector<8x8xf32>
    %cst_15 = arith.constant dense<0xFF800000> : vector<8xf32>
    %42 = vector.multi_reduction <maximumf>, %41, %cst_15 [1] : vector<8x8xf32> to vector<8xf32>
    %43 = vector.shape_cast %42 : vector<8xf32> to vector<8x1xf32>
    %44 = vector.broadcast %43 : vector<8x1xf32> to vector<8x8xf32>
    %45 = arith.subf %41, %44 : vector<8x8xf32>
    %46 = math.exp %45 : vector<8x8xf32>
    %cst_16 = arith.constant dense<0.000000e+00> : vector<8xf32>
    %47 = vector.multi_reduction <add>, %46, %cst_16 [1] : vector<8x8xf32> to vector<8xf32>
    %48 = vector.shape_cast %47 : vector<8xf32> to vector<8x1xf32>
    %49 = tpu.reciprocal %48 {approx = true} : vector<8x1xf32> -> vector<8x1xf32>
    %50 = vector.broadcast %49 : vector<8x1xf32> to vector<8x8xf32>
    %51 = arith.mulf %46, %50 : vector<8x8xf32>
    %52 = arith.truncf %51 : vector<8x8xf32> to vector<8x8xbf16>
    %cst_17 = arith.constant dense<0.000000e+00> : vector<8x8xf32>
    %53 = tpu.matmul %52, %40, %cst_17 {dimension_numbers = #tpu.dot_dimension_numbers<[1], [0], [0], [1], [0, 0, 1, 1], [], []>} : vector<8x8xbf16>, vector<8x8xbf16>, vector<8x8xf32> -> vector<8x8xf32>
    %c0_18 = arith.constant 0 : index
    %c8 = arith.constant 8 : index
    %54 = vector.load %arg5[%c0_18, %c8] : memref<8x32xf32, #tpu.memory_space<vmem>>, vector<8x8xf32>
    tpu.vector_store %arg5[%c0_18, %c8], %53 {strides = array<i32>} : memref<8x32xf32, #tpu.memory_space<vmem>>, vector<8x8xf32>,
    %55 = vector.extract_strided_slice %8 {offsets = [0, 16], sizes = [8, 8], strides = [1, 1]} : vector<8x32xf32> to vector<8x8xf32>
    %cst_19 = arith.constant 0.353553385 : f32
    %56 = vector.broadcast %cst_19 : f32 to vector<8x8xf32>
    %57 = arith.mulf %55, %56 : vector<8x8xf32>
    %58 = arith.truncf %57 : vector<8x8xf32> to vector<8x8xbf16>
    %59 = vector.extract_strided_slice %9 {offsets = [0, 16], sizes = [8, 8], strides = [1, 1]} : vector<8x32xf32> to vector<8x8xf32>
    %60 = arith.truncf %59 : vector<8x8xf32> to vector<8x8xbf16>
    %61 = vector.extract_strided_slice %10 {offsets = [0, 16], sizes = [8, 8], strides = [1, 1]} : vector<8x32xf32> to vector<8x8xf32>
    %62 = arith.truncf %61 : vector<8x8xf32> to vector<8x8xbf16>
    %cst_20 = arith.constant dense<0.000000e+00> : vector<8x8xf32>
    %63 = tpu.matmul %58, %60, %cst_20 {dimension_numbers = #tpu.dot_dimension_numbers<[1], [1], [0], [0], [0, 0, 1, 0], [], []>} : vector<8x8xbf16>, vector<8x8xbf16>, vector<8x8xf32> -> vector<8x8xf32>
    %cst_21 = arith.constant dense<0xFF800000> : vector<8xf32>
    %64 = vector.multi_reduction <maximumf>, %63, %cst_21 [1] : vector<8x8xf32> to vector<8xf32>
    %65 = vector.shape_cast %64 : vector<8xf32> to vector<8x1xf32>
    %66 = vector.broadcast %65 : vector<8x1xf32> to vector<8x8xf32>
    %67 = arith.subf %63, %66 : vector<8x8xf32>
    %68 = math.exp %67 : vector<8x8xf32>
    %cst_22 = arith.constant dense<0.000000e+00> : vector<8xf32>
    %69 = vector.multi_reduction <add>, %68, %cst_22 [1] : vector<8x8xf32> to vector<8xf32>
    %70 = vector.shape_cast %69 : vector<8xf32> to vector<8x1xf32>
    %71 = tpu.reciprocal %70 {approx = true} : vector<8x1xf32> -> vector<8x1xf32>
    %72 = vector.broadcast %71 : vector<8x1xf32> to vector<8x8xf32>
    %73 = arith.mulf %68, %72 : vector<8x8xf32>
    %74 = arith.truncf %73 : vector<8x8xf32> to vector<8x8xbf16>
    %cst_23 = arith.constant dense<0.000000e+00> : vector<8x8xf32>
    %75 = tpu.matmul %74, %62, %cst_23 {dimension_numbers = #tpu.dot_dimension_numbers<[1], [0], [0], [1], [0, 0, 1, 1], [], []>} : vector<8x8xbf16>, vector<8x8xbf16>, vector<8x8xf32> -> vector<8x8xf32>
    %c0_24 = arith.constant 0 : index
    %c16 = arith.constant 16 : index
    %76 = vector.load %arg5[%c0_24, %c16] : memref<8x32xf32, #tpu.memory_space<vmem>>, vector<8x8xf32>
    tpu.vector_store %arg5[%c0_24, %c16], %75 {strides = array<i32>} : memref<8x32xf32, #tpu.memory_space<vmem>>, vector<8x8xf32>,
    %77 = vector.extract_strided_slice %8 {offsets = [0, 24], sizes = [8, 8], strides = [1, 1]} : vector<8x32xf32> to vector<8x8xf32>
    %cst_25 = arith.constant 0.353553385 : f32
    %78 = vector.broadcast %cst_25 : f32 to vector<8x8xf32>
    %79 = arith.mulf %77, %78 : vector<8x8xf32>
    %80 = arith.truncf %79 : vector<8x8xf32> to vector<8x8xbf16>
    %81 = vector.extract_strided_slice %9 {offsets = [0, 24], sizes = [8, 8], strides = [1, 1]} : vector<8x32xf32> to vector<8x8xf32>
    %82 = arith.truncf %81 : vector<8x8xf32> to vector<8x8xbf16>
    %83 = vector.extract_strided_slice %10 {offsets = [0, 24], sizes = [8, 8], strides = [1, 1]} : vector<8x32xf32> to vector<8x8xf32>
    %84 = arith.truncf %83 : vector<8x8xf32> to vector<8x8xbf16>
    %cst_26 = arith.constant dense<0.000000e+00> : vector<8x8xf32>
    %85 = tpu.matmul %80, %82, %cst_26 {dimension_numbers = #tpu.dot_dimension_numbers<[1], [1], [0], [0], [0, 0, 1, 0], [], []>} : vector<8x8xbf16>, vector<8x8xbf16>, vector<8x8xf32> -> vector<8x8xf32>
    %cst_27 = arith.constant dense<0xFF800000> : vector<8xf32>
    %86 = vector.multi_reduction <maximumf>, %85, %cst_27 [1] : vector<8x8xf32> to vector<8xf32>
    %87 = vector.shape_cast %86 : vector<8xf32> to vector<8x1xf32>
    %88 = vector.broadcast %87 : vector<8x1xf32> to vector<8x8xf32>
    %89 = arith.subf %85, %88 : vector<8x8xf32>
    %90 = math.exp %89 : vector<8x8xf32>
    %cst_28 = arith.constant dense<0.000000e+00> : vector<8xf32>
    %91 = vector.multi_reduction <add>, %90, %cst_28 [1] : vector<8x8xf32> to vector<8xf32>
    %92 = vector.shape_cast %91 : vector<8xf32> to vector<8x1xf32>
    %93 = tpu.reciprocal %92 {approx = true} : vector<8x1xf32> -> vector<8x1xf32>
    %94 = vector.broadcast %93 : vector<8x1xf32> to vector<8x8xf32>
    %95 = arith.mulf %90, %94 : vector<8x8xf32>
    %96 = arith.truncf %95 : vector<8x8xf32> to vector<8x8xbf16>
    %cst_29 = arith.constant dense<0.000000e+00> : vector<8x8xf32>
    %97 = tpu.matmul %96, %84, %cst_29 {dimension_numbers = #tpu.dot_dimension_numbers<[1], [0], [0], [1], [0, 0, 1, 1], [], []>} : vector<8x8xbf16>, vector<8x8xbf16>, vector<8x8xf32> -> vector<8x8xf32>
    %c0_30 = arith.constant 0 : index
    %c24 = arith.constant 24 : index
    %98 = vector.load %arg5[%c0_30, %c24] : memref<8x32xf32, #tpu.memory_space<vmem>>, vector<8x8xf32>
    tpu.vector_store %arg5[%c0_30, %c24], %97 {strides = array<i32>} : memref<8x32xf32, #tpu.memory_space<vmem>>, vector<8x8xf32>,
    %c0_31 = arith.constant 0 : index
    %c0_32 = arith.constant 0 : index
    %99 = vector.load %arg5[%c0_31, %c0_32] : memref<8x32xf32, #tpu.memory_space<vmem>>, vector<8x32xf32>
    %100 = arith.truncf %99 : vector<8x32xf32> to vector<8x32xbf16>
    %cst_33 = arith.constant dense<0.000000e+00> : vector<8x32xf32>
    %101 = tpu.matmul %100, %6, %cst_33 {dimension_numbers = #tpu.dot_dimension_numbers<[1], [0], [0], [1], [0, 0, 1, 1], [], []>} : vector<8x32xbf16>, vector<32x32xbf16>, vector<8x32xf32> -> vector<8x32xf32>
    %c0_34 = arith.constant 0 : index
    %c0_35 = arith.constant 0 : index
    %c0_36 = arith.constant 0 : index
    %102 = vector.load %arg4[%c0_34, %c0_35, %c0_36] : memref<1x8x32xf32, #tpu.memory_space<vmem>>, vector<1x8x32xf32>
    %103 = vector.shape_cast %102 : vector<1x8x32xf32> to vector<8x32xf32>
    %104 = vector.shape_cast %101 : vector<8x32xf32> to vector<1x8x32xf32>
    tpu.vector_store %arg4[%c0_34, %c0_35, %c0_36], %104 {strides = array<i32>} : memref<1x8x32xf32, #tpu.memory_space<vmem>>, vector<1x8x32xf32>,
    return
  }
  func.func @transform_0(%arg0: i32) -> (i32, i32, i32) {
    %c0_i32 = arith.constant 0 : i32
    %c0_i32_0 = arith.constant 0 : i32
    %c0_i32_1 = arith.constant 0 : i32
    return %arg0, %c0_i32, %c0_i32_0 : i32, i32, i32
  }
  func.func @transform_1(%arg0: i32) -> (i32, i32) {
    %c0_i32 = arith.constant 0 : i32
    %c0_i32_0 = arith.constant 0 : i32
    %c0_i32_1 = arith.constant 0 : i32
    return %c0_i32, %c0_i32_0 : i32, i32
  }
  func.func @transform_2(%arg0: i32) -> (i32, i32) {
    %c0_i32 = arith.constant 0 : i32
    %c0_i32_0 = arith.constant 0 : i32
    %c0_i32_1 = arith.constant 0 : i32
    return %c0_i32, %c0_i32_0 : i32, i32
  }
  func.func @transform_3(%arg0: i32) -> (i32, i32, i32) {
    %c0_i32 = arith.constant 0 : i32
    %c0_i32_0 = arith.constant 0 : i32
    %c0_i32_1 = arith.constant 0 : i32
    return %arg0, %c0_i32, %c0_i32_0 : i32, i32, i32
  }
}

</mosaic_0001>

<llo_original>
// kernel: tpu_custom_call.1
$region0: #{tpu_custom_call.1}
  #allocation0 [shape = 'u32[]', space=smem, size = 0x4, offset = 0x4, fixed_abs, tag = 'smem constant byte address 0x4 - core index']
  #allocation1 [shape = 'u32[144,128]{1,0:T(1,128)}', space=vmem, size = 0x12000, scoped, tag = 'internal scratch']
  #allocation2 [shape = 'f32[8,32]{1,0:T(8,128)}', space=vmem, size = 0x1000, scoped, tag = 'scratch operand']
  %s0 = inlined_call_operand.hbm [shape: f32[2,8,32], index: 0, kind: input, shape index: {}]
  %s1 = inlined_call_operand.hbm [shape: f32[32,96], index: 1, kind: input, shape index: {}]
  %s2 = inlined_call_operand.hbm [shape: f32[32,32], index: 2, kind: input, shape index: {}]
  %s3 = inlined_call_operand.hbm [shape: f32[2,8,32], index: 3, kind: output, shape index: {}]
  %s4 = sld [smem:[#allocation0]]
  $region57: #{tpu_custom_call.1} parent=0
    _
  %s6 = ssub.s32 1, %s4
  %s7 = scalar_select 0, %s6, %s4
  $region1: #{tpu_custom_call.1} parent=0
    #allocation3 [shape = 'u8[8192]{0}', space=vmem, size = 0x2000, scoped, tag = 'input window, operand 0']
    #allocation4 [shape = 's32[2]{0}', space=sflag, size = 0x8, scoped, tag = 'scoped memory for tpu_custom_call.1']
    #allocation5 [shape = 's32[2]{0}', space=sflag, size = 0x8, scoped, tag = 'scoped memory for tpu_custom_call.1']
    #allocation6 [shape = 'u8[16384]{0}', space=vmem, size = 0x4000, scoped, tag = 'input window, operand 1, single buffered']
    #allocation7 [shape = 's32[1]{0}', space=sflag, size = 0x4, scoped, tag = 'scoped memory for tpu_custom_call.1']
    #allocation8 [shape = 'u8[16384]{0}', space=vmem, size = 0x4000, scoped, tag = 'input window, operand 2, single buffered']
    #allocation9 [shape = 'u8[8192]{0}', space=vmem, size = 0x2000, scoped, tag = 'output window, operand 0']
    %8 = vsyncpa [#allocation4], 0
    %s9 = scalar_lea.sflag [#allocation4], 1
    %10 = vsyncpa %s9, 0
    %11 = vsyncpa [#allocation7], 0
    %12 = vsyncpa [#allocation5], 0
    %s13 = scalar_lea.sflag [#allocation5], 1
    %14 = vsyncpa %s13, 0
    loop: start=0, step=1, limit=4
    $region2: #{tpu_custom_call.1} parent=1 // loop_pre_header
      _
    $region3: #{tpu_custom_call.1} parent=1 // loop_header
      %s16 = sphi 0, %s20
      %p17 = scmp.ge.s32.totalorder %s16, 4
      %s26 = sphi 0, %s28
      %s29 = sphi 0, %s26
      %s30 = sphi 0, %s29
      %s46 = sphi 0, %s30
      %s50 = sphi 0, %s50
      %s52 = sphi 0, %s50
      %s53 = sphi 0, %s52
      %s67 = sphi 0, %s53
      %s71 = sphi 0, %s71
      %s73 = sphi 0, %s71
      %s74 = sphi 0, %s73
      %s88 = sphi 0, %s74
      %s94 = sphi 0, %s96
      %s97 = sphi 0, %s94
      %s98 = sphi 0, %s97
      %s114 = sphi 0, %s98
    $region4: #{tpu_custom_call.1} parent=1 // loop_header_branch
      %19 = sbr.rel (%p17) target = $region8
    $region5: #{tpu_custom_call.1} parent=1 // loop_body
      %s21 = ssub.s32 %s16, 1
      %s22 = ssub.s32 %s16, 2
      %s23 = sadd.s32 %s16, 1
      %s24 = ssub.s32 %s16, %s23
      %p25 = scmp.eq.s32.totalorder %s24, 0
      %s27 = sadd.s32 %s26, 1
      %s28 = scalar_select %p25, %s26, %s27
      %p31 = pneg %p25
      %p32 = scmp.eq.s32.totalorder %s16, 1
      %p33 = por %p31, %p32
      %p34 = scmp.ne.s32.totalorder %s26, %s29
      %p35 = scmp.eq.s32.totalorder %s16, 0
      %p36 = por %p34, %p35
      %p37 = scmp.ne.s32.totalorder %s26, %s29
      %p38 = scmp.eq.s32.totalorder %s21, 1
      %p39 = por %p37, %p38
      %p40 = scmp.ne.s32.totalorder %s29, %s30
      %p41 = scmp.eq.s32.totalorder %s21, 0
      %p42 = por %p40, %p41
      %p43 = scmp.ne.s32.totalorder %s29, %s30
      %p44 = scmp.eq.s32.totalorder %s22, 1
      %p45 = por %p43, %p44
      %p47 = scmp.ne.s32.totalorder %s30, %s46
      %p48 = scmp.eq.s32.totalorder %s22, 0
      %p49 = por %p47, %p48
      %s51 = sadd.s32 %s50, 1
      %p54 = scmp.eq.s32.totalorder %s16, 1
      %p55 = scmp.ne.s32.totalorder %s50, %s52
      %p56 = scmp.eq.s32.totalorder %s16, 0
      %p57 = por %p55, %p56
      %p58 = scmp.ne.s32.totalorder %s50, %s52
      %p59 = scmp.eq.s32.totalorder %s21, 1
      %p60 = por %p58, %p59
      %p61 = scmp.ne.s32.totalorder %s52, %s53
      %p62 = scmp.eq.s32.totalorder %s21, 0
      %p63 = por %p61, %p62
      %p64 = scmp.ne.s32.totalorder %s52, %s53
      %p65 = scmp.eq.s32.totalorder %s22, 1
      %p66 = por %p64, %p65
      %p68 = scmp.ne.s32.totalorder %s53, %s67
      %p69 = scmp.eq.s32.totalorder %s22, 0
      %p70 = por %p68, %p69
      %s72 = sadd.s32 %s71, 1
      %p75 = scmp.eq.s32.totalorder %s16, 1
      %p76 = scmp.ne.s32.totalorder %s71, %s73
      %p77 = scmp.eq.s32.totalorder %s16, 0
      %p78 = por %p76, %p77
      %p79 = scmp.ne.s32.totalorder %s71, %s73
      %p80 = scmp.eq.s32.totalorder %s21, 1
      %p81 = por %p79, %p80
      %p82 = scmp.ne.s32.totalorder %s73, %s74
      %p83 = scmp.eq.s32.totalorder %s21, 0
      %p84 = por %p82, %p83
      %p85 = scmp.ne.s32.totalorder %s73, %s74
      %p86 = scmp.eq.s32.totalorder %s22, 1
      %p87 = por %p85, %p86
      %p89 = scmp.ne.s32.totalorder %s74, %s88
      %p90 = scmp.eq.s32.totalorder %s22, 0
      %p91 = por %p89, %p90
      %s92 = ssub.s32 %s16, %s23
      %p93 = scmp.eq.s32.totalorder %s92, 0
      %s95 = sadd.s32 %s94, 1
      %s96 = scalar_select %p93, %s94, %s95
      %p99 = pneg %p93
      %p100 = scmp.eq.s32.totalorder %s16, 1
      %p101 = por %p99, %p100
      %p102 = scmp.ne.s32.totalorder %s94, %s97
      %p103 = scmp.eq.s32.totalorder %s16, 0
      %p104 = por %p102, %p103
      %p105 = scmp.ne.s32.totalorder %s94, %s97
      %p106 = scmp.eq.s32.totalorder %s21, 1
      %p107 = por %p105, %p106
      %p108 = scmp.ne.s32.totalorder %s97, %s98
      %p109 = scmp.eq.s32.totalorder %s21, 0
      %p110 = por %p108, %p109
      %p111 = scmp.ne.s32.totalorder %s97, %s98
      %p112 = scmp.eq.s32.totalorder %s22, 1
      %p113 = por %p111, %p112
      %p115 = scmp.ne.s32.totalorder %s98, %s114
      %p116 = scmp.eq.s32.totalorder %s22, 0
      %p117 = por %p115, %p116
      %p118 = scmp.le.s32.totalorder 1, %s16
      %p119 = scmp.lt.s32.totalorder %s16, 3
      %p120 = pnand %p118, %p119
      %p121 = pneg %p120
      // Predicated region
      $region9: #{tpu_custom_call.1} parent=5 // pred_check
        _
      $region10: #{tpu_custom_call.1} parent=5 // pred_check_branch
        %123 = sbr.rel (%p120) target = $region12
      $region11: #{tpu_custom_call.1} parent=5 // pred_region
        %s124 = ssub.s32 %s16, 1
        // Predicated region
        $region13: #{tpu_custom_call.1} parent=11 // pred_check
          %p125 = pneg %p63
        $region14: #{tpu_custom_call.1} parent=11 // pred_check_branch
          %127 = sbr.rel (%p125) target = $region16
        $region15: #{tpu_custom_call.1} parent=11 // pred_region
          %s129 = ssub.s32 512, 512
          %130 = vsyncadd [#allocation7], %s129
          %s131 = sshll.u32 [#allocation6], 4
          %s132 = int_to_ptr.vmem [resolvable:$true] %s131
          %137 = dma.hbm_to_vmem [thread:$0]  %s1, 512, %s132, [#allocation7], 128, 128, 8
        $region16: #{tpu_custom_call.1} parent=11 // pred_fallthru
          _
        // Predicated region
        $region17: #{tpu_custom_call.1} parent=11 // pred_check
          %p138 = pneg %p84
        $region18: #{tpu_custom_call.1} parent=11 // pred_check_branch
          %140 = sbr.rel (%p138) target = $region20
        $region19: #{tpu_custom_call.1} parent=11 // pred_region
          %s142 = ssub.s32 512, 512
          %143 = vsyncadd [#allocation7], %s142
          %s144 = sshll.u32 [#allocation8], 4
          %s145 = int_to_ptr.vmem [resolvable:$true] %s144
          %150 = dma.hbm_to_vmem [thread:$0]  %s2, 512, %s145, [#allocation7], 128, 128, 8
        $region20: #{tpu_custom_call.1} parent=11 // pred_fallthru
          _
      $region12: #{tpu_custom_call.1} parent=5 // pred_fallthru
        _
      %p151 = scmp.lt.s32.totalorder %s16, 2
      // Predicated region
      $region21: #{tpu_custom_call.1} parent=5 // pred_check
        %p152 = pneg %p151
      $region22: #{tpu_custom_call.1} parent=5 // pred_check_branch
        %154 = sbr.rel (%p152) target = $region24
      $region23: #{tpu_custom_call.1} parent=5 // pred_region
        // Predicated region
        $region25: #{tpu_custom_call.1} parent=23 // pred_check
          %p155 = pneg %p36
        $region26: #{tpu_custom_call.1} parent=23 // pred_check_branch
          %157 = sbr.rel (%p155) target = $region28
        $region27: #{tpu_custom_call.1} parent=23 // pred_region
          %s158 = sand.u32 %s26, 1
          %s159 = scalar_lea.sflag [#allocation4], %s158
          %s160 = sand.u32 %s26, 1
          %s161 = smul.addr %s160, 8
          %s162 = scalar_lea.vmem [#allocation3], %s161
          %s164 = ssub.s32 128, 128
          %165 = vsyncadd %s159, %s164
          %s166 = smul.addr %s16, 128
          %s167 = scalar_lea.hbm %s0, %s166
          %s169 = sshll.u32 %s162, 4
          %s170 = int_to_ptr.vmem [resolvable:$true] %s169
          %172 = dma.hbm_to_vmem [thread:$0]  %s167, 128, %s170, %s159
        $region28: #{tpu_custom_call.1} parent=23 // pred_fallthru
          _
      $region24: #{tpu_custom_call.1} parent=5 // pred_fallthru
        _
      %p173 = scmp.le.s32.totalorder 1, %s16
      %p174 = scmp.lt.s32.totalorder %s16, 3
      %p175 = pnand %p173, %p174
      %p176 = pneg %p175
      // Predicated region
      $region29: #{tpu_custom_call.1} parent=5 // pred_check
        _
      $region30: #{tpu_custom_call.1} parent=5 // pred_check_branch
        %178 = sbr.rel (%p175) target = $region32
      $region31: #{tpu_custom_call.1} parent=5 // pred_region
        %s179 = ssub.s32 %s16, 1
        %s180 = sand.u32 %s29, 1
        %s181 = scalar_lea.sflag [#allocation4], %s180
        %s182 = sand.u32 %s29, 1
        %s183 = smul.addr %s182, 8
        %s184 = scalar_lea.vmem [#allocation3], %s183
        // Predicated region
        $region33: #{tpu_custom_call.1} parent=31 // pred_check
          %p185 = pneg %p42
        $region34: #{tpu_custom_call.1} parent=31 // pred_check_branch
          %187 = sbr.rel (%p185) target = $region36
        $region35: #{tpu_custom_call.1} parent=31 // pred_region
          %188 = dma.done %s181, 128
        $region36: #{tpu_custom_call.1} parent=31 // pred_fallthru
          _
        // Predicated region
        $region37: #{tpu_custom_call.1} parent=31 // pred_check
          %p189 = pneg %p63
        $region38: #{tpu_custom_call.1} parent=31 // pred_check_branch
          %191 = sbr.rel (%p189) target = $region40
        $region39: #{tpu_custom_call.1} parent=31 // pred_region
          %192 = dma.done [#allocation7], 512
        $region40: #{tpu_custom_call.1} parent=31 // pred_fallthru
          _
        // Predicated region
        $region41: #{tpu_custom_call.1} parent=31 // pred_check
          %p193 = pneg %p84
        $region42: #{tpu_custom_call.1} parent=31 // pred_check_branch
          %195 = sbr.rel (%p193) target = $region44
        $region43: #{tpu_custom_call.1} parent=31 // pred_region
          %196 = dma.done [#allocation7], 512
        $region44: #{tpu_custom_call.1} parent=31 // pred_fallthru
          _
        %s197 = sand.u32 %s29, 1
        %s198 = scalar_lea.sflag [#allocation4], %s197
        %s199 = sand.u32 %s29, 1
        %s200 = smul.addr %s199, 8
        %s201 = scalar_lea.vmem [#allocation3], %s200
        %p202 = pneg %p42
        %p203 = pneg %p39
        %p204 = pneg %p63
        %p205 = pneg %p60
        %p206 = pneg %p84
        %p207 = pneg %p81
        %p208 = pneg %p110
        %p209 = pneg %p107
        %s210 = sand.u32 %s97, 1
        %s211 = scalar_lea.sflag [#allocation5], %s210
        %s212 = sand.u32 %s97, 1
        %s213 = smul.addr %s212, 8
        %s214 = scalar_lea.vmem [#allocation9], %s213
        %v216 = vld [vmem:[%s184] sm:$0xff]
        %v217 = vpack.c.bf16 %v216, %v216
        %v218 = vld [vmem:[#allocation6] sm:$0xff]
        %v219 = vld [vmem:[#allocation6 + $0x8] sm:$0xff]
        %v220 = vld [vmem:[#allocation6 + $0x10] sm:$0xff]
        %v221 = vld [vmem:[#allocation6 + $0x18] sm:$0xff]
        %v222 = vpack.c.bf16 %v219, %v218
        %v223 = vpack.c.bf16 %v221, %v220
        %v224 = vld [vmem:[#allocation8] sm:$0xff]
        %v225 = vld [vmem:[#allocation8 + $0x8] sm:$0xff]
        %v226 = vld [vmem:[#allocation8 + $0x10] sm:$0xff]
        %v227 = vld [vmem:[#allocation8 + $0x18] sm:$0xff]
        %v228 = vpack.c.bf16 %v225, %v224
        %v229 = vpack.c.bf16 %v227, %v226
        %vm230 = vcmask 261120
        %v232 = vsel %vm230, %v217, 0
        %234 = vmatprep.subr.bf16.mxu0 0
        %235 = vmatpush1.bf16.msra.mxu0 %v222
        %236 = vmatprep.subr.bf16.mxu0 0
        %237 = vmatpush1.bf16.msra.mxu0 %v223
        %238 = vmatprep.subr.bf16.mxu0 0
        %239 = vmatpush1.bf16.msra.mxu0 0
        %240 = vmatprep.subr.bf16.mxu0 0
        %241 = vmatpush1.bf16.msra.mxu0 0
        %242 = vmatprep.subr.bf16.mxu0 0
        %243 = vmatpush1.bf16.msra.mxu0 0
        %244 = vmatprep.subr.bf16.mxu0 0
        %245 = vmatpush1.bf16.msra.mxu0 0
        %246 = vmatprep.subr.bf16.mxu0 0
        %247 = vmatpush1.bf16.msra.mxu0 0
        %248 = vmatprep.subr.bf16.mxu0 0
        %249 = vmatpush1.bf16.msra.mxu0 0
        %250 = vmatprep.subr.bf16.mxu0 0
        %251 = vmatpush1.bf16.msra.mxu0 0
        %252 = vmatprep.subr.bf16.mxu0 0
        %253 = vmatpush1.bf16.msra.mxu0 0
        %254 = vmatprep.subr.bf16.mxu0 0
        %255 = vmatpush1.bf16.msra.mxu0 0
        %256 = vmatprep.subr.bf16.mxu0 0
        %257 = vmatpush1.bf16.msra.mxu0 0
        %258 = vmatprep.subr.bf16.mxu0 0
        %259 = vmatpush1.bf16.msra.mxu0 0
        %260 = vmatprep.subr.bf16.mxu0 0
        %261 = vmatpush1.bf16.msra.mxu0 0
        %262 = vmatprep.subr.bf16.mxu0 0
        %263 = vmatpush1.bf16.msra.mxu0 0
        %264 = vmatprep.subr.bf16.mxu0 0
        %265 = vmatpush1.bf16.msra.mxu0 0
        %266 = vmatprep.mubr.bf16.mxu0 0
        %267 = vmatmul.mubr.bf16.gmra.mrb[0].mxu0 %v232
        %v268 = vpop.f32.mrb[0].mxu0
        %v269 = vadd.f32 0.0, %v268
        %v270 = vpop.f32.mrb[0].mxu0
        %v271 = vpop.f32.mrb[0].mxu0
        %v272 = vpop.f32.mrb[0].mxu0
        %273 = vdwg.mxu0
        %v274 = vmul.f32 %v269, 0.35355338
        %v275 = vpack.c.bf16 %v274, %v274
        %v276 = vpack.c.bf16 %v269, %v269
        %278 = vrot.lane.b32.xlu0 %v276, 96
        %v279 = vpop.permute.xlu0 %278
        %vm280 = vcmask 64512
        %v282 = vsel %vm280, %v275, 0
        %v285 = vsel %vm280, %v279, 0
        %287 = vmatprep.subr.bf16.mxu0 0
        %288 = vmatpush1.bf16.xpose.msra.mxu0 %v285
        %289 = vmatprep.subr.bf16.mxu0 0
        %290 = vmatpush1.bf16.xpose.msra.mxu0 0
        %291 = vmatprep.subr.bf16.mxu0 0
        %292 = vmatpush1.bf16.xpose.msra.mxu0 0
        %293 = vmatprep.subr.bf16.mxu0 0
        %294 = vmatpush1.bf16.xpose.msra.mxu0 0
        %295 = vmatprep.subr.bf16.mxu0 0
        %296 = vmatpush1.bf16.xpose.msra.mxu0 0
        %297 = vmatprep.subr.bf16.mxu0 0
        %298 = vmatpush1.bf16.xpose.msra.mxu0 0
        %299 = vmatprep.subr.bf16.mxu0 0
        %300 = vmatpush1.bf16.xpose.msra.mxu0 0
        %301 = vmatprep.subr.bf16.mxu0 0
        %302 = vmatpush1.bf16.xpose.msra.mxu0 0
        %303 = vmatprep.subr.bf16.mxu0 0
        %304 = vmatpush1.bf16.xpose.msra.mxu0 0
        %305 = vmatprep.subr.bf16.mxu0 0
        %306 = vmatpush1.bf16.xpose.msra.mxu0 0
        %307 = vmatprep.subr.bf16.mxu0 0
        %308 = vmatpush1.bf16.xpose.msra.mxu0 0
        %309 = vmatprep.subr.bf16.mxu0 0
        %310 = vmatpush1.bf16.xpose.msra.mxu0 0
        %311 = vmatprep.subr.bf16.mxu0 0
        %312 = vmatpush1.bf16.xpose.msra.mxu0 0
        %313 = vmatprep.subr.bf16.mxu0 0
        %314 = vmatpush1.bf16.xpose.msra.mxu0 0
        %315 = vmatprep.subr.bf16.mxu0 0
        %316 = vmatpush1.bf16.xpose.msra.mxu0 0
        %317 = vmatprep.subr.bf16.mxu0 0
        %318 = vmatpush1.bf16.xpose.msra.mxu0 0
        %319 = vmatprep.mubr.bf16.mxu0 0
        %320 = vmatmul.mubr.bf16.gmra.mrb[0].mxu0 %v282
        %v321 = vpop.f32.mrb[0].mxu0
        %v322 = vadd.f32 0.0, %v321
        %v323 = vpop.f32.mrb[0].mxu0
        %v324 = vpop.f32.mrb[0].mxu0
        %v325 = vpop.f32.mrb[0].mxu0
        %326 = vdwg.mxu0
        %v327 = vsel %vm280, %v322, -inf
        %328 = vmax.xlane.f32.xlu0 %v327
        %v329 = vpop.xlane.xlu0 %328
        %v330 = vsub.f32 %v322, %v329
        %v331 = vmul.f32 %v330, 1.442695
        %v332 = vpow.pop %v331
        %v333 = vsel %vm280, %v332, 0.0
        %334 = vadd.xlane.f32.xlu0 %v333
        %v335 = vpop.xlane.xlu0 %334
        %v336 = vrcp.pop %v335
        %v337 = vmul.f32 %v332, %v336
        %v338 = vpack.c.bf16 %v337, %v337
        %339 = vrot.lane.b32.xlu0 %v276, 64
        %v340 = vpop.permute.xlu0 %339
        %v342 = vsel %vm280, %v338, 0
        %vm344 = vcmask 1043456
        %v346 = vsel %vm344, %v340, 0
        %348 = vmatprep.subr.bf16.mxu0 0
        %349 = vmatpush1.bf16.msra.mxu0 %v346
        %350 = vmatprep.subr.bf16.mxu0 0
        %351 = vmatpush1.bf16.msra.mxu0 0
        %352 = vmatprep.subr.bf16.mxu0 0
        %353 = vmatpush1.bf16.msra.mxu0 0
        %354 = vmatprep.subr.bf16.mxu0 0
        %355 = vmatpush1.bf16.msra.mxu0 0
        %356 = vmatprep.subr.bf16.mxu0 0
        %357 = vmatpush1.bf16.msra.mxu0 0
        %358 = vmatprep.subr.bf16.mxu0 0
        %359 = vmatpush1.bf16.msra.mxu0 0
        %360 = vmatprep.subr.bf16.mxu0 0
        %361 = vmatpush1.bf16.msra.mxu0 0
        %362 = vmatprep.subr.bf16.mxu0 0
        %363 = vmatpush1.bf16.msra.mxu0 0
        %364 = vmatprep.subr.bf16.mxu0 0
        %365 = vmatpush1.bf16.msra.mxu0 0
        %366 = vmatprep.subr.bf16.mxu0 0
        %367 = vmatpush1.bf16.msra.mxu0 0
        %368 = vmatprep.subr.bf16.mxu0 0
        %369 = vmatpush1.bf16.msra.mxu0 0
        %370 = vmatprep.subr.bf16.mxu0 0
        %371 = vmatpush1.bf16.msra.mxu0 0
        %372 = vmatprep.subr.bf16.mxu0 0
        %373 = vmatpush1.bf16.msra.mxu0 0
        %374 = vmatprep.subr.bf16.mxu0 0
        %375 = vmatpush1.bf16.msra.mxu0 0
        %376 = vmatprep.subr.bf16.mxu0 0
        %377 = vmatpush1.bf16.msra.mxu0 0
        %378 = vmatprep.subr.bf16.mxu0 0
        %379 = vmatpush1.bf16.msra.mxu0 0
        %380 = vmatprep.mubr.bf16.mxu0 0
        %381 = vmatmul.mubr.bf16.gmra.mrb[0].mxu0 %v342
        %v382 = vpop.f32.mrb[0].mxu0
        %v383 = vadd.f32 0.0, %v382
        %v384 = vpop.f32.mrb[0].mxu0
        %v385 = vpop.f32.mrb[0].mxu0
        %v386 = vpop.f32.mrb[0].mxu0
        %387 = vdwg.mxu0
        %388 = vst.msk [vmem:[#allocation2] sm:$0xff] %vm280, %v383
        %390 = vrot.lane.b32.xlu0 %v275, 120
        %v391 = vpop.permute.xlu0 %390
        %392 = vrot.lane.b32.xlu0 %v276, 88
        %v393 = vpop.permute.xlu0 %392
        %v395 = vsel %vm280, %v391, 0
        %v398 = vsel %vm280, %v393, 0
        %400 = vmatprep.subr.bf16.mxu0 0
        %401 = vmatpush1.bf16.xpose.msra.mxu0 %v398
        %402 = vmatprep.subr.bf16.mxu0 0
        %403 = vmatpush1.bf16.xpose.msra.mxu0 0
        %404 = vmatprep.subr.bf16.mxu0 0
        %405 = vmatpush1.bf16.xpose.msra.mxu0 0
        %406 = vmatprep.subr.bf16.mxu0 0
        %407 = vmatpush1.bf16.xpose.msra.mxu0 0
        %408 = vmatprep.subr.bf16.mxu0 0
        %409 = vmatpush1.bf16.xpose.msra.mxu0 0
        %410 = vmatprep.subr.bf16.mxu0 0
        %411 = vmatpush1.bf16.xpose.msra.mxu0 0
        %412 = vmatprep.subr.bf16.mxu0 0
        %413 = vmatpush1.bf16.xpose.msra.mxu0 0
        %414 = vmatprep.subr.bf16.mxu0 0
        %415 = vmatpush1.bf16.xpose.msra.mxu0 0
        %416 = vmatprep.subr.bf16.mxu0 0
        %417 = vmatpush1.bf16.xpose.msra.mxu0 0
        %418 = vmatprep.subr.bf16.mxu0 0
        %419 = vmatpush1.bf16.xpose.msra.mxu0 0
        %420 = vmatprep.subr.bf16.mxu0 0
        %421 = vmatpush1.bf16.xpose.msra.mxu0 0
        %422 = vmatprep.subr.bf16.mxu0 0
        %423 = vmatpush1.bf16.xpose.msra.mxu0 0
        %424 = vmatprep.subr.bf16.mxu0 0
        %425 = vmatpush1.bf16.xpose.msra.mxu0 0
        %426 = vmatprep.subr.bf16.mxu0 0
        %427 = vmatpush1.bf16.xpose.msra.mxu0 0
        %428 = vmatprep.subr.bf16.mxu0 0
        %429 = vmatpush1.bf16.xpose.msra.mxu0 0
        %430 = vmatprep.subr.bf16.mxu0 0
        %431 = vmatpush1.bf16.xpose.msra.mxu0 0
        %432 = vmatprep.mubr.bf16.mxu0 0
        %433 = vmatmul.mubr.bf16.gmra.mrb[0].mxu0 %v395
        %v434 = vpop.f32.mrb[0].mxu0
        %v435 = vadd.f32 0.0, %v434
        %v436 = vpop.f32.mrb[0].mxu0
        %v437 = vpop.f32.mrb[0].mxu0
        %v438 = vpop.f32.mrb[0].mxu0
        %439 = vdwg.mxu0
        %v440 = vsel %vm280, %v435, -inf
        %441 = vmax.xlane.f32.xlu0 %v440
        %v442 = vpop.xlane.xlu0 %441
        %v443 = vsub.f32 %v435, %v442
        %v444 = vmul.f32 %v443, 1.442695
        %v445 = vpow.pop %v444
        %v446 = vsel %vm280, %v445, 0.0
        %447 = vadd.xlane.f32.xlu0 %v446
        %v448 = vpop.xlane.xlu0 %447
        %v449 = vrcp.pop %v448
        %v450 = vmul.f32 %v445, %v449
        %v451 = vpack.c.bf16 %v450, %v450
        %452 = vrot.lane.b32.xlu0 %v276, 56
        %v453 = vpop.permute.xlu0 %452
        %v455 = vsel %vm280, %v451, 0
        %v458 = vsel %vm344, %v453, 0
        %460 = vmatprep.subr.bf16.mxu0 0
        %461 = vmatpush1.bf16.msra.mxu0 %v458
        %462 = vmatprep.subr.bf16.mxu0 0
        %463 = vmatpush1.bf16.msra.mxu0 0
        %464 = vmatprep.subr.bf16.mxu0 0
        %465 = vmatpush1.bf16.msra.mxu0 0
        %466 = vmatprep.subr.bf16.mxu0 0
        %467 = vmatpush1.bf16.msra.mxu0 0
        %468 = vmatprep.subr.bf16.mxu0 0
        %469 = vmatpush1.bf16.msra.mxu0 0
        %470 = vmatprep.subr.bf16.mxu0 0
        %471 = vmatpush1.bf16.msra.mxu0 0
        %472 = vmatprep.subr.bf16.mxu0 0
        %473 = vmatpush1.bf16.msra.mxu0 0
        %474 = vmatprep.subr.bf16.mxu0 0
        %475 = vmatpush1.bf16.msra.mxu0 0
        %476 = vmatprep.subr.bf16.mxu0 0
        %477 = vmatpush1.bf16.msra.mxu0 0
        %478 = vmatprep.subr.bf16.mxu0 0
        %479 = vmatpush1.bf16.msra.mxu0 0
        %480 = vmatprep.subr.bf16.mxu0 0
        %481 = vmatpush1.bf16.msra.mxu0 0
        %482 = vmatprep.subr.bf16.mxu0 0
        %483 = vmatpush1.bf16.msra.mxu0 0
        %484 = vmatprep.subr.bf16.mxu0 0
        %485 = vmatpush1.bf16.msra.mxu0 0
        %486 = vmatprep.subr.bf16.mxu0 0
        %487 = vmatpush1.bf16.msra.mxu0 0
        %488 = vmatprep.subr.bf16.mxu0 0
        %489 = vmatpush1.bf16.msra.mxu0 0
        %490 = vmatprep.subr.bf16.mxu0 0
        %491 = vmatpush1.bf16.msra.mxu0 0
        %492 = vmatprep.mubr.bf16.mxu0 0
        %493 = vmatmul.mubr.bf16.gmra.mrb[0].mxu0 %v455
        %v494 = vpop.f32.mrb[0].mxu0
        %v495 = vadd.f32 0.0, %v494
        %v496 = vpop.f32.mrb[0].mxu0
        %v497 = vpop.f32.mrb[0].mxu0
        %v498 = vpop.f32.mrb[0].mxu0
        %499 = vdwg.mxu0
        %501 = vrot.lane.b32.xlu0 %v495, 8
        %v502 = vpop.permute.xlu0 %501
        %vm504 = vcmask 130112
        %505 = vst.msk [vmem:[#allocation2] sm:$0xff] %vm504, %v502
        %506 = vrot.lane.b32.xlu0 %v275, 112
        %v507 = vpop.permute.xlu0 %506
        %508 = vrot.lane.b32.xlu0 %v276, 80
        %v509 = vpop.permute.xlu0 %508
        %v511 = vsel %vm280, %v507, 0
        %v514 = vsel %vm280, %v509, 0
        %516 = vmatprep.subr.bf16.mxu0 0
        %517 = vmatpush1.bf16.xpose.msra.mxu0 %v514
        %518 = vmatprep.subr.bf16.mxu0 0
        %519 = vmatpush1.bf16.xpose.msra.mxu0 0
        %520 = vmatprep.subr.bf16.mxu0 0
        %521 = vmatpush1.bf16.xpose.msra.mxu0 0
        %522 = vmatprep.subr.bf16.mxu0 0
        %523 = vmatpush1.bf16.xpose.msra.mxu0 0
        %524 = vmatprep.subr.bf16.mxu0 0
        %525 = vmatpush1.bf16.xpose.msra.mxu0 0
        %526 = vmatprep.subr.bf16.mxu0 0
        %527 = vmatpush1.bf16.xpose.msra.mxu0 0
        %528 = vmatprep.subr.bf16.mxu0 0
        %529 = vmatpush1.bf16.xpose.msra.mxu0 0
        %530 = vmatprep.subr.bf16.mxu0 0
        %531 = vmatpush1.bf16.xpose.msra.mxu0 0
        %532 = vmatprep.subr.bf16.mxu0 0
        %533 = vmatpush1.bf16.xpose.msra.mxu0 0
        %534 = vmatprep.subr.bf16.mxu0 0
        %535 = vmatpush1.bf16.xpose.msra.mxu0 0
        %536 = vmatprep.subr.bf16.mxu0 0
        %537 = vmatpush1.bf16.xpose.msra.mxu0 0
        %538 = vmatprep.subr.bf16.mxu0 0
        %539 = vmatpush1.bf16.xpose.msra.mxu0 0
        %540 = vmatprep.subr.bf16.mxu0 0
        %541 = vmatpush1.bf16.xpose.msra.mxu0 0
        %542 = vmatprep.subr.bf16.mxu0 0
        %543 = vmatpush1.bf16.xpose.msra.mxu0 0
        %544 = vmatprep.subr.bf16.mxu0 0
        %545 = vmatpush1.bf16.xpose.msra.mxu0 0
        %546 = vmatprep.subr.bf16.mxu0 0
        %547 = vmatpush1.bf16.xpose.msra.mxu0 0
        %548 = vmatprep.mubr.bf16.mxu0 0
        %549 = vmatmul.mubr.bf16.gmra.mrb[0].mxu0 %v511
        %v550 = vpop.f32.mrb[0].mxu0
        %v551 = vadd.f32 0.0, %v550
        %v552 = vpop.f32.mrb[0].mxu0
        %v553 = vpop.f32.mrb[0].mxu0
        %v554 = vpop.f32.mrb[0].mxu0
        %555 = vdwg.mxu0
        %v556 = vsel %vm280, %v551, -inf
        %557 = vmax.xlane.f32.xlu0 %v556
        %v558 = vpop.xlane.xlu0 %557
        %v559 = vsub.f32 %v551, %v558
        %v560 = vmul.f32 %v559, 1.442695
        %v561 = vpow.pop %v560
        %v562 = vsel %vm280, %v561, 0.0
        %563 = vadd.xlane.f32.xlu0 %v562
        %v564 = vpop.xlane.xlu0 %563
        %v565 = vrcp.pop %v564
        %v566 = vmul.f32 %v561, %v565
        %v567 = vpack.c.bf16 %v566, %v566
        %568 = vrot.lane.b32.xlu0 %v276, 48
        %v569 = vpop.permute.xlu0 %568
        %v571 = vsel %vm280, %v567, 0
        %v574 = vsel %vm344, %v569, 0
        %576 = vmatprep.subr.bf16.mxu0 0
        %577 = vmatpush1.bf16.msra.mxu0 %v574
        %578 = vmatprep.subr.bf16.mxu0 0
        %579 = vmatpush1.bf16.msra.mxu0 0
        %580 = vmatprep.subr.bf16.mxu0 0
        %581 = vmatpush1.bf16.msra.mxu0 0
        %582 = vmatprep.subr.bf16.mxu0 0
        %583 = vmatpush1.bf16.msra.mxu0 0
        %584 = vmatprep.subr.bf16.mxu0 0
        %585 = vmatpush1.bf16.msra.mxu0 0
        %586 = vmatprep.subr.bf16.mxu0 0
        %587 = vmatpush1.bf16.msra.mxu0 0
        %588 = vmatprep.subr.bf16.mxu0 0
        %589 = vmatpush1.bf16.msra.mxu0 0
        %590 = vmatprep.subr.bf16.mxu0 0
        %591 = vmatpush1.bf16.msra.mxu0 0
        %592 = vmatprep.subr.bf16.mxu0 0
        %593 = vmatpush1.bf16.msra.mxu0 0
        %594 = vmatprep.subr.bf16.mxu0 0
        %595 = vmatpush1.bf16.msra.mxu0 0
        %596 = vmatprep.subr.bf16.mxu0 0
        %597 = vmatpush1.bf16.msra.mxu0 0
        %598 = vmatprep.subr.bf16.mxu0 0
        %599 = vmatpush1.bf16.msra.mxu0 0
        %600 = vmatprep.subr.bf16.mxu0 0
        %601 = vmatpush1.bf16.msra.mxu0 0
        %602 = vmatprep.subr.bf16.mxu0 0
        %603 = vmatpush1.bf16.msra.mxu0 0
        %604 = vmatprep.subr.bf16.mxu0 0
        %605 = vmatpush1.bf16.msra.mxu0 0
        %606 = vmatprep.subr.bf16.mxu0 0
        %607 = vmatpush1.bf16.msra.mxu0 0
        %608 = vmatprep.mubr.bf16.mxu0 0
        %609 = vmatmul.mubr.bf16.gmra.mrb[0].mxu0 %v571
        %v610 = vpop.f32.mrb[0].mxu0
        %v611 = vadd.f32 0.0, %v610
        %v612 = vpop.f32.mrb[0].mxu0
        %v613 = vpop.f32.mrb[0].mxu0
        %v614 = vpop.f32.mrb[0].mxu0
        %615 = vdwg.mxu0
        %617 = vrot.lane.b32.xlu0 %v611, 16
        %v618 = vpop.permute.xlu0 %617
        %vm620 = vcmask 195712
        %621 = vst.msk [vmem:[#allocation2] sm:$0xff] %vm620, %v618
        %622 = vrot.lane.b32.xlu0 %v275, 104
        %v623 = vpop.permute.xlu0 %622
        %624 = vrot.lane.b32.xlu0 %v276, 72
        %v625 = vpop.permute.xlu0 %624
        %v627 = vsel %vm280, %v623, 0
        %v630 = vsel %vm280, %v625, 0
        %632 = vmatprep.subr.bf16.mxu0 0
        %633 = vmatpush1.bf16.xpose.msra.mxu0 %v630
        %634 = vmatprep.subr.bf16.mxu0 0
        %635 = vmatpush1.bf16.xpose.msra.mxu0 0
        %636 = vmatprep.subr.bf16.mxu0 0
        %637 = vmatpush1.bf16.xpose.msra.mxu0 0
        %638 = vmatprep.subr.bf16.mxu0 0
        %639 = vmatpush1.bf16.xpose.msra.mxu0 0
        %640 = vmatprep.subr.bf16.mxu0 0
        %641 = vmatpush1.bf16.xpose.msra.mxu0 0
        %642 = vmatprep.subr.bf16.mxu0 0
        %643 = vmatpush1.bf16.xpose.msra.mxu0 0
        %644 = vmatprep.subr.bf16.mxu0 0
        %645 = vmatpush1.bf16.xpose.msra.mxu0 0
        %646 = vmatprep.subr.bf16.mxu0 0
        %647 = vmatpush1.bf16.xpose.msra.mxu0 0
        %648 = vmatprep.subr.bf16.mxu0 0
        %649 = vmatpush1.bf16.xpose.msra.mxu0 0
        %650 = vmatprep.subr.bf16.mxu0 0
        %651 = vmatpush1.bf16.xpose.msra.mxu0 0
        %652 = vmatprep.subr.bf16.mxu0 0
        %653 = vmatpush1.bf16.xpose.msra.mxu0 0
        %654 = vmatprep.subr.bf16.mxu0 0
        %655 = vmatpush1.bf16.xpose.msra.mxu0 0
        %656 = vmatprep.subr.bf16.mxu0 0
        %657 = vmatpush1.bf16.xpose.msra.mxu0 0
        %658 = vmatprep.subr.bf16.mxu0 0
        %659 = vmatpush1.bf16.xpose.msra.mxu0 0
        %660 = vmatprep.subr.bf16.mxu0 0
        %661 = vmatpush1.bf16.xpose.msra.mxu0 0
        %662 = vmatprep.subr.bf16.mxu0 0
        %663 = vmatpush1.bf16.xpose.msra.mxu0 0
        %664 = vmatprep.mubr.bf16.mxu0 0
        %665 = vmatmul.mubr.bf16.gmra.mrb[0].mxu0 %v627
        %v666 = vpop.f32.mrb[0].mxu0
        %v667 = vadd.f32 0.0, %v666
        %v668 = vpop.f32.mrb[0].mxu0
        %v669 = vpop.f32.mrb[0].mxu0
        %v670 = vpop.f32.mrb[0].mxu0
        %671 = vdwg.mxu0
        %v672 = vsel %vm280, %v667, -inf
        %673 = vmax.xlane.f32.xlu0 %v672
        %v674 = vpop.xlane.xlu0 %673
        %v675 = vsub.f32 %v667, %v674
        %v676 = vmul.f32 %v675, 1.442695
        %v677 = vpow.pop %v676
        %v678 = vsel %vm280, %v677, 0.0
        %679 = vadd.xlane.f32.xlu0 %v678
        %v680 = vpop.xlane.xlu0 %679
        %v681 = vrcp.pop %v680
        %v682 = vmul.f32 %v677, %v681
        %v683 = vpack.c.bf16 %v682, %v682
        %684 = vrot.lane.b32.xlu0 %v276, 40
        %v685 = vpop.permute.xlu0 %684
        %v687 = vsel %vm280, %v683, 0
        %v690 = vsel %vm344, %v685, 0
        %692 = vmatprep.subr.bf16.mxu0 0
        %693 = vmatpush1.bf16.msra.mxu0 %v690
        %694 = vmatprep.subr.bf16.mxu0 0
        %695 = vmatpush1.bf16.msra.mxu0 0
        %696 = vmatprep.subr.bf16.mxu0 0
        %697 = vmatpush1.bf16.msra.mxu0 0
        %698 = vmatprep.subr.bf16.mxu0 0
        %699 = vmatpush1.bf16.msra.mxu0 0
        %700 = vmatprep.subr.bf16.mxu0 0
        %701 = vmatpush1.bf16.msra.mxu0 0
        %702 = vmatprep.subr.bf16.mxu0 0
        %703 = vmatpush1.bf16.msra.mxu0 0
        %704 = vmatprep.subr.bf16.mxu0 0
        %705 = vmatpush1.bf16.msra.mxu0 0
        %706 = vmatprep.subr.bf16.mxu0 0
        %707 = vmatpush1.bf16.msra.mxu0 0
        %708 = vmatprep.subr.bf16.mxu0 0
        %709 = vmatpush1.bf16.msra.mxu0 0
        %710 = vmatprep.subr.bf16.mxu0 0
        %711 = vmatpush1.bf16.msra.mxu0 0
        %712 = vmatprep.subr.bf16.mxu0 0
        %713 = vmatpush1.bf16.msra.mxu0 0
        %714 = vmatprep.subr.bf16.mxu0 0
        %715 = vmatpush1.bf16.msra.mxu0 0
        %716 = vmatprep.subr.bf16.mxu0 0
        %717 = vmatpush1.bf16.msra.mxu0 0
        %718 = vmatprep.subr.bf16.mxu0 0
        %719 = vmatpush1.bf16.msra.mxu0 0
        %720 = vmatprep.subr.bf16.mxu0 0
        %721 = vmatpush1.bf16.msra.mxu0 0
        %722 = vmatprep.subr.bf16.mxu0 0
        %723 = vmatpush1.bf16.msra.mxu0 0
        %724 = vmatprep.mubr.bf16.mxu0 0
        %725 = vmatmul.mubr.bf16.gmra.mrb[0].mxu0 %v687
        %v726 = vpop.f32.mrb[0].mxu0
        %v727 = vadd.f32 0.0, %v726
        %v728 = vpop.f32.mrb[0].mxu0
        %v729 = vpop.f32.mrb[0].mxu0
        %v730 = vpop.f32.mrb[0].mxu0
        %731 = vdwg.mxu0
        %733 = vrot.lane.b32.xlu0 %v727, 24
        %v734 = vpop.permute.xlu0 %733
        %vm736 = vcmask 261312
        %737 = vst.msk [vmem:[#allocation2] sm:$0xff] %vm736, %v734
        %v738 = vld [vmem:[#allocation2] sm:$0xff]
        %v739 = vpack.c.bf16 %v738, %v738
        %v741 = vsel %vm230, %v739, 0
        %743 = vmatprep.subr.bf16.mxu0 0
        %744 = vmatpush1.bf16.msra.mxu0 %v228
        %745 = vmatprep.subr.bf16.mxu0 0
        %746 = vmatpush1.bf16.msra.mxu0 %v229
        %747 = vmatprep.subr.bf16.mxu0 0
        %748 = vmatpush1.bf16.msra.mxu0 0
        %749 = vmatprep.subr.bf16.mxu0 0
        %750 = vmatpush1.bf16.msra.mxu0 0
        %751 = vmatprep.subr.bf16.mxu0 0
        %752 = vmatpush1.bf16.msra.mxu0 0
        %753 = vmatprep.subr.bf16.mxu0 0
        %754 = vmatpush1.bf16.msra.mxu0 0
        %755 = vmatprep.subr.bf16.mxu0 0
        %756 = vmatpush1.bf16.msra.mxu0 0
        %757 = vmatprep.subr.bf16.mxu0 0
        %758 = vmatpush1.bf16.msra.mxu0 0
        %759 = vmatprep.subr.bf16.mxu0 0
        %760 = vmatpush1.bf16.msra.mxu0 0
        %761 = vmatprep.subr.bf16.mxu0 0
        %762 = vmatpush1.bf16.msra.mxu0 0
        %763 = vmatprep.subr.bf16.mxu0 0
        %764 = vmatpush1.bf16.msra.mxu0 0
        %765 = vmatprep.subr.bf16.mxu0 0
        %766 = vmatpush1.bf16.msra.mxu0 0
        %767 = vmatprep.subr.bf16.mxu0 0
        %768 = vmatpush1.bf16.msra.mxu0 0
        %769 = vmatprep.subr.bf16.mxu0 0
        %770 = vmatpush1.bf16.msra.mxu0 0
        %771 = vmatprep.subr.bf16.mxu0 0
        %772 = vmatpush1.bf16.msra.mxu0 0
        %773 = vmatprep.subr.bf16.mxu0 0
        %774 = vmatpush1.bf16.msra.mxu0 0
        %775 = vmatprep.mubr.bf16.mxu0 0
        %776 = vmatmul.mubr.bf16.gmra.mrb[0].mxu0 %v741
        %v777 = vpop.f32.mrb[0].mxu0
        %v778 = vadd.f32 0.0, %v777
        %v779 = vpop.f32.mrb[0].mxu0
        %v780 = vpop.f32.mrb[0].mxu0
        %v781 = vpop.f32.mrb[0].mxu0
        %782 = vdwg.mxu0
        %783 = vst.msk [vmem:[%s214] sm:$0xff] %vm230, %v778
        %s784 = sand.u32 %s97, 1
        %s785 = scalar_lea.sflag [#allocation5], %s784
        %s786 = sand.u32 %s97, 1
        %s787 = smul.addr %s786, 8
        %s788 = scalar_lea.vmem [#allocation9], %s787
        // Predicated region
        $region45: #{tpu_custom_call.1} parent=31 // pred_check
          %p789 = pneg %p107
        $region46: #{tpu_custom_call.1} parent=31 // pred_check_branch
          %791 = sbr.rel (%p789) target = $region48
        $region47: #{tpu_custom_call.1} parent=31 // pred_region
          %s793 = ssub.s32 128, 128
          %794 = vsyncadd %s785, %s793
          %s795 = smul.addr %s21, 128
          %s796 = scalar_lea.hbm %s3, %s795
          %s798 = sshll.u32 %s788, 4
          %s799 = int_to_ptr.vmem [resolvable:$true] %s798
          %801 = dma.vmem_to_hbm [thread:$0]  %s799, 128, %s796, %s785
        $region48: #{tpu_custom_call.1} parent=31 // pred_fallthru
          _
      $region32: #{tpu_custom_call.1} parent=5 // pred_fallthru
        _
      %p802 = scmp.le.s32.totalorder 2, %s16
      // Predicated region
      $region49: #{tpu_custom_call.1} parent=5 // pred_check
        %p803 = pneg %p802
      $region50: #{tpu_custom_call.1} parent=5 // pred_check_branch
        %805 = sbr.rel (%p803) target = $region52
      $region51: #{tpu_custom_call.1} parent=5 // pred_region
        %s806 = ssub.s32 %s16, 2
        // Predicated region
        $region53: #{tpu_custom_call.1} parent=51 // pred_check
          %p807 = pneg %p113
        $region54: #{tpu_custom_call.1} parent=51 // pred_check_branch
          %809 = sbr.rel (%p807) target = $region56
        $region55: #{tpu_custom_call.1} parent=51 // pred_region
          %s810 = sand.u32 %s98, 1
          %s811 = scalar_lea.sflag [#allocation5], %s810
          %s812 = sand.u32 %s98, 1
          %s813 = smul.addr %s812, 8
          %s814 = scalar_lea.vmem [#allocation9], %s813
          %815 = dma.done %s811, 128
        $region56: #{tpu_custom_call.1} parent=51 // pred_fallthru
          _
      $region52: #{tpu_custom_call.1} parent=5 // pred_fallthru
        _
    $region6: #{tpu_custom_call.1} parent=1 // loop_footer
      %s20 = sadd.s32 1, %s16
    $region7: #{tpu_custom_call.1} parent=1 // loop_footer_branch
      %15 = sbr.rel target = $region3
    $region8: #{tpu_custom_call.1} parent=1 // loop_exit
      _
    %816 = vsyncpa [#allocation4], 1
    %s817 = scalar_lea.sflag [#allocation4], 1
    %818 = vsyncpa %s817, 1
    %819 = vsyncpa [#allocation7], 1
    %820 = vsyncpa [#allocation5], 1
    %s821 = scalar_lea.sflag [#allocation5], 1
    %822 = vsyncpa %s821, 1

</llo_original>
